<compile_context>
chip_gen: v5e
topology: v5e:2x2
jax: 0.10.0
libtpu: 0.0.40
codegen_flags: <defaults>
</compile_context>

<pallas_src>
import jax
import jax.numpy as jnp
from jax.experimental import pallas as pl
from jax.experimental.pallas import tpu as pltpu


# ----------------------------- Pallas kernel --------------------------------
def make_mlp_kernel(vpu_out: bool):
    """vpu_out=True: final layer is h2 * w3_vec + lane-reduce (out_dim == 1).
    vpu_out=False: final layer is an MXU dot with unpadded (H, out_dim) w3."""

    def kernel(x_ref, w1_ref, b1_ref, w2_ref, b2_ref, w3_ref, b3_ref, o_ref):
        # bf16 operands feed the MXU; accumulation, bias-add and ReLU stay f32.
        x = x_ref[...].astype(jnp.bfloat16)

        h1 = jnp.dot(x, w1_ref[...], preferred_element_type=jnp.float32) + b1_ref[...]
        h1 = jnp.maximum(h1, 0.0)

        h2 = jnp.dot(h1.astype(jnp.bfloat16), w2_ref[...],
                     preferred_element_type=jnp.float32) + b2_ref[...]
        h2 = jnp.maximum(h2, 0.0)

        if vpu_out:
            # (tm, H) * (1, H) -> lane-reduce to (tm, 1). VPU+XLU, no MXU,
            # no (tm, 128) f32 intermediate, no padded output traffic.
            y = jnp.sum(h2 * w3_ref[...], axis=-1, keepdims=True) + b3_ref[...]
        else:
            y = jnp.dot(h2.astype(jnp.bfloat16), w3_ref[...],
                        preferred_element_type=jnp.float32) + b3_ref[...]

        o_ref[...] = y.astype(o_ref.dtype)

    return kernel


# ------------------------------- wrapper -------------------------------------
def discriminator_forward(x, params, out_dim, block_rows=2048):
    """x: [B, input_dim] (f32 or bf16).  params from init_params()."""
    B, in_dim = x.shape
    w1, b1 = params["w1"], params["b1"]
    w2, b2 = params["w2"], params["b2"]
    b3 = params["b3"]
    h2x, hid = w1.shape[1], w2.shape[1]

    use_vpu_out = (out_dim == 1)
    w3 = params["w3"] if use_vpu_out else params["w3t"]

    # Batch tiling: large tiles to amortize per-step overhead; no jnp.pad —
    # pl.cdiv grid lets Pallas mask the partial boundary block.
    tm = B if B <= block_rows else block_rows        # tm==B (full dim) or mult of 8
    grid = (pl.cdiv(B, tm),)

    def const_spec(a):                               # VMEM-resident across grid
        return pl.BlockSpec(a.shape, lambda i: (0, 0))

    flops = 2 * B * (in_dim * h2x + h2x * hid + hid * out_dim)
    bytes_accessed = int(
        x.size * x.dtype.itemsize + 4 * B * out_dim
        + sum(int(p.size) * p.dtype.itemsize for p in (w1, b1, w2, b2, w3, b3)))

    y = pl.pallas_call(
        make_mlp_kernel(use_vpu_out),
        out_shape=jax.ShapeDtypeStruct((B, out_dim), jnp.float32),
        grid=grid,
        in_specs=[pl.BlockSpec((tm, in_dim), lambda i: (i, 0)),
                  const_spec(w1), const_spec(b1),
                  const_spec(w2), const_spec(b2),
                  const_spec(w3), const_spec(b3)],
        out_specs=pl.BlockSpec((tm, out_dim), lambda i: (i, 0)),
        compiler_params=pltpu.CompilerParams(
            dimension_semantics=("parallel",)),      # dual-TC on v7x when grid>1
        cost_estimate=pl.CostEstimate(flops=flops, transcendentals=0,
                                      bytes_accessed=bytes_accessed),
    )(x, w1, b1, w2, b2, w3, b3)

    return y


# ------------------------- parameter setup (glue) ---------------------------
def spectral_normalize(w, key, n_iters=30):
    """PyTorch spectral_norm forward semantics: W / sigma_max(W).
    w is in PyTorch layout [out, in]; power iteration with a fixed random u."""
    out_f, _ = w.shape
    u = jax.random.normal(key, (out_f,), w.dtype)
    u = u / (jnp.linalg.norm(u) + 1e-12)

    def body(_, u):
        v = w.T @ u
        v = v / (jnp.linalg.norm(v) + 1e-12)
        u = w @ v
        u = u / (jnp.linalg.norm(u) + 1e-12)
        return u

    u = jax.lax.fori_loop(0, n_iters, body, u)
    v = w.T @ u
    v = v / (jnp.linalg.norm(v) + 1e-12)
    sigma = u @ (w @ v)
    return w / sigma


def init_params(key, input_dim, hidden_layers, out_dim):
    """nn.Linear-style init (uniform +/- 1/sqrt(fan_in)) in PyTorch [out, in]
    layout, spectral-normalize layers 1 & 2, then convert to kernel layout:
    w1/w2 [in, out] bf16, biases f32 [1, out]. The last layer is kept both as
    [out_dim, H] f32 (VPU path, out_dim==1) and [H, out_dim] bf16 (MXU path)."""
    def linear(k, fan_in, fan_out):
        kw, kb = jax.random.split(k)
        bound = 1.0 / jnp.sqrt(fan_in)
        w = jax.random.uniform(kw, (fan_out, fan_in), jnp.float32, -bound, bound)
        b = jax.random.uniform(kb, (fan_out,), jnp.float32, -bound, bound)
        return w, b

    k1, k2, k3 = jax.random.split(key, 3)
    w1, b1 = linear(k1, input_dim, hidden_layers * 2)
    w2, b2 = linear(k2, hidden_layers * 2, hidden_layers)
    w3, b3 = linear(k3, hidden_layers, out_dim)

    w1 = spectral_normalize(w1, k1)
    w2 = spectral_normalize(w2, k2)

    return {
        "w1": w1.T.astype(jnp.bfloat16), "b1": b1.reshape(1, -1),
        "w2": w2.T.astype(jnp.bfloat16), "b2": b2.reshape(1, -1),
        "w3": w3,                                # (out_dim, H) f32  — VPU path
        "w3t": w3.T.astype(jnp.bfloat16),        # (H, out_dim) bf16 — MXU path
        "b3": b3.reshape(1, -1),
    }


# reference (plain JAX, mirrors the kernel's bf16-operand / f32-accum math)
def reference_forward(x, p, out_dim):
    xb = x.astype(jnp.bfloat16)
    h1 = jnp.maximum(
        jnp.dot(xb, p["w1"], preferred_element_type=jnp.float32) + p["b1"], 0.0)
    h2 = jnp.maximum(
        jnp.dot(h1.astype(jnp.bfloat16), p["w2"],
                preferred_element_type=jnp.float32) + p["b2"], 0.0)
    if out_dim == 1:
        y = jnp.sum(h2 * p["w3"], axis=-1, keepdims=True) + p["b3"]
    else:
        y = jnp.dot(h2.astype(jnp.bfloat16), p["w3t"],
                    preferred_element_type=jnp.float32) + p["b3"]
    return y


if __name__ == "__main__":
    input_dim, hidden_layers, out_dim = 32, 16, 1
    batch = 8

    key = jax.random.PRNGKey(0)
    kx, kp = jax.random.split(key)
    x = jax.random.normal(kx, (batch, input_dim), dtype=jnp.float32)
    params = init_params(kp, input_dim, hidden_layers, out_dim)

    y = discriminator_forward(x, params, out_dim)
    y = jax.block_until_ready(y)

    y_ref = reference_forward(x, params, out_dim)
    assert y.shape == (batch, out_dim)
    assert jnp.allclose(y, y_ref, atol=1e-3, rtol=1e-3), \
        float(jnp.max(jnp.abs(y - y_ref)))

    print("KERNEL_OK")
</pallas_src>

<mosaic_0001>
module attributes {stable_mosaic.version = 11 : i64} {
  func.func @kernel(%arg0: i32, %arg1: memref<8x32xf32, #tpu.memory_space<vmem>>, %arg2: memref<32x32xbf16, #tpu.memory_space<vmem>>, %arg3: memref<1x32xf32, #tpu.memory_space<vmem>>, %arg4: memref<32x16xbf16, #tpu.memory_space<vmem>>, %arg5: memref<1x16xf32, #tpu.memory_space<vmem>>, %arg6: memref<1x16xf32, #tpu.memory_space<vmem>>, %arg7: memref<1x1xf32, #tpu.memory_space<vmem>>, %arg8: memref<8x1xf32, #tpu.memory_space<vmem>>) attributes {dimension_semantics = [#tpu.dimension_semantics<parallel>], iteration_bounds = array<i64: 1>, scalar_prefetch = 0 : i64, scratch_operands = 0 : i64, tpu.core_type = #tpu.core_type<tc>, window_params = [{transform_indices = @transform_0, window_bounds = array<i64: 8, 32>}, {pipeline_mode = #tpu.pipeline_mode<synchronous>, transform_indices = @transform_1, window_bounds = array<i64: 32, 32>}, {pipeline_mode = #tpu.pipeline_mode<synchronous>, transform_indices = @transform_2, window_bounds = array<i64: 1, 32>}, {pipeline_mode = #tpu.pipeline_mode<synchronous>, transform_indices = @transform_3, window_bounds = array<i64: 32, 16>}, {pipeline_mode = #tpu.pipeline_mode<synchronous>, transform_indices = @transform_4, window_bounds = array<i64: 1, 16>}, {pipeline_mode = #tpu.pipeline_mode<synchronous>, transform_indices = @transform_5, window_bounds = array<i64: 1, 16>}, {pipeline_mode = #tpu.pipeline_mode<synchronous>, transform_indices = @transform_6, window_bounds = array<i64: 1, 1>}, {transform_indices = @transform_7, window_bounds = array<i64: 8, 1>}]} {
    %c0 = arith.constant 0 : index
    %c0_0 = arith.constant 0 : index
    %0 = vector.load %arg1[%c0, %c0_0] : memref<8x32xf32, #tpu.memory_space<vmem>>, vector<8x32xf32>
    %1 = arith.truncf %0 : vector<8x32xf32> to vector<8x32xbf16>
    %c0_1 = arith.constant 0 : index
    %c0_2 = arith.constant 0 : index
    %2 = vector.load %arg2[%c0_1, %c0_2] : memref<32x32xbf16, #tpu.memory_space<vmem>>, vector<32x32xbf16>
    %cst = arith.constant dense<0.000000e+00> : vector<8x32xf32>
    %3 = tpu.matmul %1, %2, %cst {dimension_numbers = #tpu.dot_dimension_numbers<[1], [0], [0], [1], [0, 0, 1, 1], [], []>} : vector<8x32xbf16>, vector<32x32xbf16>, vector<8x32xf32> -> vector<8x32xf32>
    %c0_3 = arith.constant 0 : index
    %c0_4 = arith.constant 0 : index
    %4 = vector.load %arg3[%c0_3, %c0_4] : memref<1x32xf32, #tpu.memory_space<vmem>>, vector<1x32xf32>
    %5 = vector.broadcast %4 : vector<1x32xf32> to vector<8x32xf32>
    %6 = arith.addf %3, %5 : vector<8x32xf32>
    %cst_5 = arith.constant 0.000000e+00 : f32
    %7 = vector.broadcast %cst_5 : f32 to vector<8x32xf32>
    %8 = arith.maximumf %6, %7 : vector<8x32xf32>
    %9 = arith.truncf %8 : vector<8x32xf32> to vector<8x32xbf16>
    %c0_6 = arith.constant 0 : index
    %c0_7 = arith.constant 0 : index
    %10 = vector.load %arg4[%c0_6, %c0_7] : memref<32x16xbf16, #tpu.memory_space<vmem>>, vector<32x16xbf16>
    %cst_8 = arith.constant dense<0.000000e+00> : vector<8x16xf32>
    %11 = tpu.matmul %9, %10, %cst_8 {dimension_numbers = #tpu.dot_dimension_numbers<[1], [0], [0], [1], [0, 0, 1, 1], [], []>} : vector<8x32xbf16>, vector<32x16xbf16>, vector<8x16xf32> -> vector<8x16xf32>
    %c0_9 = arith.constant 0 : index
    %c0_10 = arith.constant 0 : index
    %12 = vector.load %arg5[%c0_9, %c0_10] : memref<1x16xf32, #tpu.memory_space<vmem>>, vector<1x16xf32>
    %13 = vector.broadcast %12 : vector<1x16xf32> to vector<8x16xf32>
    %14 = arith.addf %11, %13 : vector<8x16xf32>
    %cst_11 = arith.constant 0.000000e+00 : f32
    %15 = vector.broadcast %cst_11 : f32 to vector<8x16xf32>
    %16 = arith.maximumf %14, %15 : vector<8x16xf32>
    %c0_12 = arith.constant 0 : index
    %c0_13 = arith.constant 0 : index
    %17 = vector.load %arg6[%c0_12, %c0_13] : memref<1x16xf32, #tpu.memory_space<vmem>>, vector<1x16xf32>
    %18 = vector.broadcast %17 : vector<1x16xf32> to vector<8x16xf32>
    %19 = arith.mulf %16, %18 : vector<8x16xf32>
    %cst_14 = arith.constant dense<0.000000e+00> : vector<8xf32>
    %20 = vector.multi_reduction <add>, %19, %cst_14 [1] : vector<8x16xf32> to vector<8xf32>
    %21 = vector.shape_cast %20 : vector<8xf32> to vector<8x1xf32>
    %c0_15 = arith.constant 0 : index
    %c0_16 = arith.constant 0 : index
    %22 = vector.load %arg7[%c0_15, %c0_16] : memref<1x1xf32, #tpu.memory_space<vmem>>, vector<1x1xf32>
    %23 = vector.broadcast %22 : vector<1x1xf32> to vector<8x1xf32>
    %24 = arith.addf %21, %23 : vector<8x1xf32>
    %c0_17 = arith.constant 0 : index
    %c0_18 = arith.constant 0 : index
    %25 = vector.load %arg8[%c0_17, %c0_18] : memref<8x1xf32, #tpu.memory_space<vmem>>, vector<8x1xf32>
    tpu.vector_store %arg8[%c0_17, %c0_18], %24 {strides = array<i32>} : memref<8x1xf32, #tpu.memory_space<vmem>>, vector<8x1xf32>,
    return
  }
  func.func @transform_0(%arg0: i32) -> (i32, i32) {
    %c0_i32 = arith.constant 0 : i32
    %c0_i32_0 = arith.constant 0 : i32
    return %arg0, %c0_i32 : i32, i32
  }
  func.func @transform_1(%arg0: i32) -> (i32, i32) {
    %c0_i32 = arith.constant 0 : i32
    %c0_i32_0 = arith.constant 0 : i32
    %c0_i32_1 = arith.constant 0 : i32
    return %c0_i32, %c0_i32_0 : i32, i32
  }
  func.func @transform_2(%arg0: i32) -> (i32, i32) {
    %c0_i32 = arith.constant 0 : i32
    %c0_i32_0 = arith.constant 0 : i32
    %c0_i32_1 = arith.constant 0 : i32
    return %c0_i32, %c0_i32_0 : i32, i32
  }
  func.func @transform_3(%arg0: i32) -> (i32, i32) {
    %c0_i32 = arith.constant 0 : i32
    %c0_i32_0 = arith.constant 0 : i32
    %c0_i32_1 = arith.constant 0 : i32
    return %c0_i32, %c0_i32_0 : i32, i32
  }
  func.func @transform_4(%arg0: i32) -> (i32, i32) {
    %c0_i32 = arith.constant 0 : i32
    %c0_i32_0 = arith.constant 0 : i32
    %c0_i32_1 = arith.constant 0 : i32
    return %c0_i32, %c0_i32_0 : i32, i32
  }
  func.func @transform_5(%arg0: i32) -> (i32, i32) {
    %c0_i32 = arith.constant 0 : i32
    %c0_i32_0 = arith.constant 0 : i32
    %c0_i32_1 = arith.constant 0 : i32
    return %c0_i32, %c0_i32_0 : i32, i32
  }
  func.func @transform_6(%arg0: i32) -> (i32, i32) {
    %c0_i32 = arith.constant 0 : i32
    %c0_i32_0 = arith.constant 0 : i32
    %c0_i32_1 = arith.constant 0 : i32
    return %c0_i32, %c0_i32_0 : i32, i32
  }
  func.func @transform_7(%arg0: i32) -> (i32, i32) {
    %c0_i32 = arith.constant 0 : i32
    %c0_i32_0 = arith.constant 0 : i32
    return %arg0, %c0_i32 : i32, i32
  }
}

</mosaic_0001>

<llo_original>
// kernel: tpu_custom_call.1
$region0: #{tpu_custom_call.1}
  #allocation0 [shape = 'u32[]', space=smem, size = 0x4, offset = 0x4, fixed_abs, tag = 'smem constant byte address 0x4 - core index']
  #allocation1 [shape = 'u32[72,128]{1,0:T(1,128)}', space=vmem, size = 0x9000, scoped, tag = 'internal scratch']
  #allocation2 [shape = 'f32[1,1]{1,0:T(1,128)S(1)}', space=vmem, size = 0x200, scoped, tag = 'scoped memory for tpu_custom_call.1']
  %s0 = inlined_call_operand.vmem [shape: f32[8,32], index: 0, kind: input, shape index: {}]
  %s1 = inlined_call_operand.vmem [shape: bf16[32,32], index: 1, kind: input, shape index: {}]
  %s2 = inlined_call_operand.vmem [shape: f32[1,32], index: 2, kind: input, shape index: {}]
  %s3 = inlined_call_operand.vmem [shape: bf16[32,16], index: 3, kind: input, shape index: {}]
  %s4 = inlined_call_operand.vmem [shape: f32[1,16], index: 4, kind: input, shape index: {}]
  %s5 = inlined_call_operand.vmem [shape: f32[1,16], index: 5, kind: input, shape index: {}]
  %s6 = inlined_call_operand.<no memory space> [shape: f32[1,1], index: 6, kind: input, shape index: {}]
  %s7 = inlined_call_operand.vmem [shape: f32[8,1], index: 7, kind: output, shape index: {}]
  %s8 = sld [smem:[#allocation0]]
  $region38: #{tpu_custom_call.1} parent=0
    _
  %s10 = ssub.s32 1, %s8
  %s11 = scalar_select 0, %s10, %s8
  %v12 = vstv %s6
  %13 = vst [vmem:[#allocation2] sm:$0x1] %v12
  // Predicated region
  $region2: #{tpu_custom_call.1} parent=0 // pred_check
    _
  $region3: #{tpu_custom_call.1} parent=0 // pred_check_branch
    %15 = sbr.rel (0) target = $region5
  $region4: #{tpu_custom_call.1} parent=0 // pred_region
    _
  $region5: #{tpu_custom_call.1} parent=0 // pred_fallthru
    _
  // Predicated region
  $region6: #{tpu_custom_call.1} parent=0 // pred_check
    _
  $region7: #{tpu_custom_call.1} parent=0 // pred_check_branch
    %17 = sbr.rel (0) target = $region9
  $region8: #{tpu_custom_call.1} parent=0 // pred_region
    _
  $region9: #{tpu_custom_call.1} parent=0 // pred_fallthru
    _
  // Predicated region
  $region10: #{tpu_custom_call.1} parent=0 // pred_check
    _
  $region11: #{tpu_custom_call.1} parent=0 // pred_check_branch
    %19 = sbr.rel (0) target = $region13
  $region12: #{tpu_custom_call.1} parent=0 // pred_region
    _
  $region13: #{tpu_custom_call.1} parent=0 // pred_fallthru
    _
  // Predicated region
  $region14: #{tpu_custom_call.1} parent=0 // pred_check
    _
  $region15: #{tpu_custom_call.1} parent=0 // pred_check_branch
    %21 = sbr.rel (0) target = $region17
  $region16: #{tpu_custom_call.1} parent=0 // pred_region
    _
  $region17: #{tpu_custom_call.1} parent=0 // pred_fallthru
    _
  // Predicated region
  $region18: #{tpu_custom_call.1} parent=0 // pred_check
    _
  $region19: #{tpu_custom_call.1} parent=0 // pred_check_branch
    %23 = sbr.rel (0) target = $region21
  $region20: #{tpu_custom_call.1} parent=0 // pred_region
    _
  $region21: #{tpu_custom_call.1} parent=0 // pred_fallthru
    _
  // Predicated region
  $region22: #{tpu_custom_call.1} parent=0 // pred_check
    _
  $region23: #{tpu_custom_call.1} parent=0 // pred_check_branch
    %25 = sbr.rel (0) target = $region25
  $region24: #{tpu_custom_call.1} parent=0 // pred_region
    _
  $region25: #{tpu_custom_call.1} parent=0 // pred_fallthru
    _
  // Predicated region
  $region26: #{tpu_custom_call.1} parent=0 // pred_check
    _
  $region27: #{tpu_custom_call.1} parent=0 // pred_check_branch
    %27 = sbr.rel (0) target = $region29
  $region28: #{tpu_custom_call.1} parent=0 // pred_region
    _
  $region29: #{tpu_custom_call.1} parent=0 // pred_fallthru
    _
  %v29 = vld [vmem:[%s0] sm:$0xff]
  %v30 = vpack.c.bf16 %v29, %v29
  %v31 = vld [vmem:[%s1] sm:$0xf]
  %v32 = vld [vmem:[%s1 + $0x4] sm:$0xf]
  %v33 = vld [vmem:[%s1 + $0x8] sm:$0xf]
  %v34 = vld [vmem:[%s1 + $0xc] sm:$0xf]
  %v35 = vld [vmem:[%s2] sm:$0x1]
  %v37 = vperm.slane %v35, 0
  %v43 = vunpack.c.l.b16 %v31
  %v44 = vunpack.c.l.b16 %v32
  %v45 = vunpack.c.l.b16 %v33
  %v46 = vunpack.c.l.b16 %v34
  %v47 = vpack.c.b16 %v44, %v43
  %v48 = vpack.c.b16 %v46, %v45
  %vm51 = vcmask 261120
  %v53 = vsel %vm51, %v30, 0
  %55 = vmatpush.bf16.msra.mxu0 0
  %56 = vmatpush.bf16.msra.mxu0 0
  %57 = vmatpush.bf16.msra.mxu0 0
  %58 = vmatpush.bf16.msra.mxu0 0
  %59 = vmatpush.bf16.msra.mxu0 0
  %60 = vmatpush.bf16.msra.mxu0 0
  %61 = vmatpush.bf16.msra.mxu0 %v48
  %62 = vmatpush.bf16.msra.mxu0 %v47
  %63 = vmatmul.bf16.gmra.mxu0 %v53
  %v64 = vpop.f32.mrf.mxu0
  %v65 = vadd.f32 %v37, %v64
  %v66 = vpop.f32.mrf.mxu0
  %67 = vdwg.mxu0
  %v68 = vmax.f32 %v65, 0.0
  %v69 = vpack.c.bf16 %v68, %v68
  %v70 = vld [vmem:[%s3] sm:$0xf]
  %v71 = vld [vmem:[%s3 + $0x4] sm:$0xf]
  %v72 = vld [vmem:[%s3 + $0x8] sm:$0xf]
  %v73 = vld [vmem:[%s3 + $0xc] sm:$0xf]
  %v74 = vld [vmem:[%s4] sm:$0x1]
  %v76 = vperm.slane %v74, 0
  %v82 = vunpack.c.l.b16 %v70
  %v83 = vunpack.c.l.b16 %v71
  %v84 = vunpack.c.l.b16 %v72
  %v85 = vunpack.c.l.b16 %v73
  %v86 = vpack.c.b16 %v83, %v82
  %v87 = vpack.c.b16 %v85, %v84
  %v91 = vsel %vm51, %v69, 0
  %93 = vmatpush.bf16.msra.mxu0 0
  %94 = vmatpush.bf16.msra.mxu0 0
  %95 = vmatpush.bf16.msra.mxu0 0
  %96 = vmatpush.bf16.msra.mxu0 0
  %97 = vmatpush.bf16.msra.mxu0 0
  %98 = vmatpush.bf16.msra.mxu0 0
  %99 = vmatpush.bf16.msra.mxu0 %v87
  %100 = vmatpush.bf16.msra.mxu0 %v86
  %101 = vmatmul.bf16.gmra.mxu0 %v91
  %v102 = vpop.f32.mrf.mxu0
  %v103 = vadd.f32 %v76, %v102
  %v104 = vpop.f32.mrf.mxu0
  %105 = vdwg.mxu0
  %v106 = vmax.f32 %v103, 0.0
  %v107 = vld [vmem:[%s5] sm:$0x1]
  %v109 = vperm.slane %v107, 0
  %v111 = vmul.f32 %v106, %v109
  %vm112 = vcmask 130048
  %v113 = vsel %vm112, %v111, 0.0
  %114 = vadd.xlane.f32.xlu0 %v113
  %v115 = vpop.xlane.xlu0 %114
  %v116 = vld [vmem:[#allocation2] sm:$0x1]
  %v118 = vperm.slane %v116, 0
  %v120 = vadd.f32 %v115, %v118
  %vm121 = vcmask 7168
  %122 = vst.msk [vmem:[%s7] sm:$0xff] %vm121, %v120
  // Predicated region
  $region30: #{tpu_custom_call.1} parent=0 // pred_check
    _
  $region31: #{tpu_custom_call.1} parent=0 // pred_check_branch
    %124 = sbr.rel (0) target = $region33
  $region32: #{tpu_custom_call.1} parent=0 // pred_region
    _
  $region33: #{tpu_custom_call.1} parent=0 // pred_fallthru
    _
  // Predicated region
  $region34: #{tpu_custom_call.1} parent=0 // pred_check
    _
  $region35: #{tpu_custom_call.1} parent=0 // pred_check_branch
    %126 = sbr.rel (0) target = $region37
  $region36: #{tpu_custom_call.1} parent=0 // pred_region
    _
  $region37: #{tpu_custom_call.1} parent=0 // pred_fallthru
    _

</llo_original>
